<compile_context>
chip_gen: v5e
topology: v5e:2x2
jax: 0.10.0
libtpu: 0.0.40
codegen_flags: <defaults>
</compile_context>

<pallas_src>
import jax
import jax.numpy as jnp
from jax.experimental import pallas as pl
from jax.experimental.pallas import tpu as pltpu


def _round_up(x, m):
    return ((x + m - 1) // m) * m


# Safe resident-VMEM budget across v5e / v6e / v7x (v7x has 64 MiB per TC).
_VMEM_BUDGET = 48 * 1024 * 1024


def _footprint_bytes(bm, d, hp):
    # double-buffered bf16 x tiles + double-buffered f32 out tiles
    # + resident bf16 W1 + f32 b1 + f32 w2_row + b2
    return 2 * bm * d * 2 + 2 * bm * 4 + d * hp * 2 + 2 * hp * 4 + 4


def net_kernel(x_ref, w1_ref, b1_ref, w2_ref, b2_ref, o_ref):
    # x_ref:  (bm, d)  bf16      w1_ref: (d, hp)  bf16      b1_ref: (1, hp) f32
    # w2_ref: (1, hp)  f32       b2_ref: (1, 1)   f32       o_ref:  (bm, 1) f32

    # hidden1: bf16 x bf16 matmul on the MXU, f32 accumulate, f32 bias add.
    h = jnp.dot(x_ref[...], w1_ref[...],
                preferred_element_type=jnp.float32) + b1_ref[...]

    # leaky_relu (PyTorch default negative_slope = 0.01)
    h = jnp.where(h > 0, h, 0.01 * h)

    # dropout(p=0.2): identity in eval/inference mode.
    # TODO(synk): training-mode dropout would need pltpu.prng_seed / prng_random_bits.

    # out layer (hidden_d -> 1): VPU multiply + XLU lane-reduce instead of an
    # N=1 MXU matmul; padded hidden lanes contribute exactly zero.
    y = jnp.sum(h * w2_ref[...], axis=-1, keepdims=True) + b2_ref[...]

    # sigmoid: exp on the EUP, approximate reciprocal also on the EUP.
    o_ref[...] = pl.reciprocal(1.0 + jnp.exp(-y), approx=True)


def net_forward(x, w1, b1, w2, b2, *, bm=1024):
    """x: (B, ...) flattened to (B, d). w1: (d, hidden_d), b1: (1, hidden_d),
    w2: (hidden_d, 1), b2: (1, 1). Returns (B, 1) float32 sigmoid outputs."""
    B = x.shape[0]
    x2 = x.reshape(B, -1)                       # glue: x.view(x.size(0), -1)
    d = x2.shape[1]
    hidden_d = w1.shape[1]

    # ---- lane-dense hidden: zero-pad hidden_d up to a multiple of 128 (exact) ----
    hp = _round_up(hidden_d, 128)
    if hp != hidden_d:
        w1 = jnp.pad(w1, ((0, 0), (0, hp - hidden_d)))
        b1 = jnp.pad(b1, ((0, 0), (0, hp - hidden_d)))
        w2 = jnp.pad(w2, ((0, hp - hidden_d), (0, 0)))
    w2_row = w2.reshape(1, hp).astype(jnp.float32)   # (1, hp) for the lane-reduce
    b1 = b1.astype(jnp.float32)
    b2 = b2.astype(jnp.float32)

    # ---- bf16 streaming of the bandwidth-dominant operands ----
    x2 = x2.astype(jnp.bfloat16)
    w1 = w1.astype(jnp.bfloat16)

    # ---- batch tile: as large as useful, capped by the VMEM budget ----
    bm_eff = _round_up(max(8, min(bm, _round_up(B, 128))), 8)
    while bm_eff > 128 and _footprint_bytes(bm_eff, d, hp) > _VMEM_BUDGET:
        bm_eff = max(128, _round_up(bm_eff // 2, 8))

    # pad the batch so any B works with a large tile (padded rows are sliced off)
    Bp = _round_up(B, bm_eff)
    if Bp != B:
        x2 = jnp.pad(x2, ((0, Bp - B), (0, 0)))
    grid = (Bp // bm_eff,)

    vmem_limit = int(min(56 * 1024 * 1024,
                         max(32 * 1024 * 1024,
                             2 * _footprint_bytes(bm_eff, d, hp))))

    out = pl.pallas_call(
        net_kernel,
        out_shape=jax.ShapeDtypeStruct((Bp, 1), jnp.float32),
        grid=grid,
        in_specs=[
            pl.BlockSpec((bm_eff, d), lambda i: (i, 0)),   # x tile per grid step
            pl.BlockSpec((d, hp), lambda i: (0, 0)),        # W1 (resident, bf16)
            pl.BlockSpec((1, hp), lambda i: (0, 0)),        # b1
            pl.BlockSpec((1, hp), lambda i: (0, 0)),        # w2 as lane row
            pl.BlockSpec((1, 1), lambda i: (0, 0)),         # b2
        ],
        out_specs=pl.BlockSpec((bm_eff, 1), lambda i: (i, 0)),
        compiler_params=pltpu.CompilerParams(
            dimension_semantics=("parallel",),
            vmem_limit_bytes=vmem_limit),
    )(x2, w1, b1, w2_row, b2)

    return out[:B]


def init_params(key, d, hidden_d):
    """Deterministic init mimicking nn.Linear's uniform(-1/sqrt(fan_in), 1/sqrt(fan_in))."""
    k1, k2, k3, k4 = jax.random.split(key, 4)
    bound1 = 1.0 / jnp.sqrt(d)
    bound2 = 1.0 / jnp.sqrt(hidden_d)
    w1 = jax.random.uniform(k1, (d, hidden_d), jnp.float32, -bound1, bound1)
    b1 = jax.random.uniform(k2, (1, hidden_d), jnp.float32, -bound1, bound1)
    w2 = jax.random.uniform(k3, (hidden_d, 1), jnp.float32, -bound2, bound2)
    b2 = jax.random.uniform(k4, (1, 1), jnp.float32, -bound2, bound2)
    return w1, b1, w2, b2


if __name__ == "__main__":
    key = jax.random.PRNGKey(0)
    kx, kp = jax.random.split(key)

    # small shapes consistent with the module: batch=8, flattened feature dim d=64
    B, d, hidden_d = 8, 64, 32
    x = jax.random.normal(kx, (B, 4, 16), jnp.float32)   # flattens to (B, 64)
    w1, b1, w2, b2 = init_params(kp, d, hidden_d)

    out = net_forward(x, w1, b1, w2, b2)
    out = jax.block_until_ready(out)

    # sanity check vs plain-JAX reference (same bf16 rounding of the streamed
    # operands; eval-mode dropout = identity)
    x2 = x.reshape(B, -1)
    xb = x2.astype(jnp.bfloat16).astype(jnp.float32)
    w1b = w1.astype(jnp.bfloat16).astype(jnp.float32)
    h_ref = xb @ w1b + b1
    h_ref = jnp.where(h_ref > 0, h_ref, 0.01 * h_ref)
    y_ref = jax.nn.sigmoid(h_ref @ w2 + b2)

    assert out.shape == (B, 1)
    assert jnp.allclose(out, y_ref, atol=5e-3), "mismatch vs reference"

    print("KERNEL_OK")
</pallas_src>

<mosaic_0001>
module attributes {stable_mosaic.version = 11 : i64} {
  func.func @net_kernel(%arg0: i32, %arg1: memref<128x64xbf16, #tpu.memory_space<vmem>>, %arg2: memref<64x128xbf16, #tpu.memory_space<vmem>>, %arg3: memref<1x128xf32, #tpu.memory_space<vmem>>, %arg4: memref<1x128xf32, #tpu.memory_space<vmem>>, %arg5: memref<1x1xf32, #tpu.memory_space<vmem>>, %arg6: memref<128x1xf32, #tpu.memory_space<vmem>>) attributes {dimension_semantics = [#tpu.dimension_semantics<parallel>], iteration_bounds = array<i64: 1>, scalar_prefetch = 0 : i64, scratch_operands = 0 : i64, tpu.core_type = #tpu.core_type<tc>, window_params = [{transform_indices = @transform_0, window_bounds = array<i64: 128, 64>}, {pipeline_mode = #tpu.pipeline_mode<synchronous>, transform_indices = @transform_1, window_bounds = array<i64: 64, 128>}, {pipeline_mode = #tpu.pipeline_mode<synchronous>, transform_indices = @transform_2, window_bounds = array<i64: 1, 128>}, {pipeline_mode = #tpu.pipeline_mode<synchronous>, transform_indices = @transform_3, window_bounds = array<i64: 1, 128>}, {pipeline_mode = #tpu.pipeline_mode<synchronous>, transform_indices = @transform_4, window_bounds = array<i64: 1, 1>}, {transform_indices = @transform_5, window_bounds = array<i64: 128, 1>}]} {
    %c0 = arith.constant 0 : index
    %c0_0 = arith.constant 0 : index
    %0 = vector.load %arg1[%c0, %c0_0] : memref<128x64xbf16, #tpu.memory_space<vmem>>, vector<128x64xbf16>
    %c0_1 = arith.constant 0 : index
    %c0_2 = arith.constant 0 : index
    %1 = vector.load %arg2[%c0_1, %c0_2] : memref<64x128xbf16, #tpu.memory_space<vmem>>, vector<64x128xbf16>
    %cst = arith.constant dense<0.000000e+00> : vector<128x128xf32>
    %2 = tpu.matmul %0, %1, %cst {dimension_numbers = #tpu.dot_dimension_numbers<[1], [0], [0], [1], [0, 0, 1, 1], [], []>} : vector<128x64xbf16>, vector<64x128xbf16>, vector<128x128xf32> -> vector<128x128xf32>
    %c0_3 = arith.constant 0 : index
    %c0_4 = arith.constant 0 : index
    %3 = vector.load %arg3[%c0_3, %c0_4] : memref<1x128xf32, #tpu.memory_space<vmem>>, vector<1x128xf32>
    %4 = vector.broadcast %3 : vector<1x128xf32> to vector<128x128xf32>
    %5 = arith.addf %2, %4 : vector<128x128xf32>
    %cst_5 = arith.constant 0.000000e+00 : f32
    %6 = vector.broadcast %cst_5 : f32 to vector<128x128xf32>
    %7 = arith.cmpf ogt, %5, %6 : vector<128x128xf32>
    %cst_6 = arith.constant 0.00999999977 : f32
    %8 = vector.broadcast %cst_6 : f32 to vector<128x128xf32>
    %9 = arith.mulf %8, %5 : vector<128x128xf32>
    %10 = arith.select %7, %5, %9 : vector<128x128xi1>, vector<128x128xf32>
    %c0_7 = arith.constant 0 : index
    %c0_8 = arith.constant 0 : index
    %11 = vector.load %arg4[%c0_7, %c0_8] : memref<1x128xf32, #tpu.memory_space<vmem>>, vector<1x128xf32>
    %12 = vector.broadcast %11 : vector<1x128xf32> to vector<128x128xf32>
    %13 = arith.mulf %10, %12 : vector<128x128xf32>
    %cst_9 = arith.constant dense<0.000000e+00> : vector<128xf32>
    %14 = vector.multi_reduction <add>, %13, %cst_9 [1] : vector<128x128xf32> to vector<128xf32>
    %15 = vector.shape_cast %14 : vector<128xf32> to vector<128x1xf32>
    %c0_10 = arith.constant 0 : index
    %c0_11 = arith.constant 0 : index
    %16 = vector.load %arg5[%c0_10, %c0_11] : memref<1x1xf32, #tpu.memory_space<vmem>>, vector<1x1xf32>
    %17 = vector.broadcast %16 : vector<1x1xf32> to vector<128x1xf32>
    %18 = arith.addf %15, %17 : vector<128x1xf32>
    %cst_12 = arith.constant 0.000000e+00 : f32
    %19 = vector.broadcast %cst_12 : f32 to vector<128x1xf32>
    %20 = arith.subf %19, %18 : vector<128x1xf32>
    %21 = math.exp %20 : vector<128x1xf32>
    %cst_13 = arith.constant 1.000000e+00 : f32
    %22 = vector.broadcast %cst_13 : f32 to vector<128x1xf32>
    %23 = arith.addf %22, %21 : vector<128x1xf32>
    %24 = tpu.reciprocal %23 {approx = true} : vector<128x1xf32> -> vector<128x1xf32>
    %c0_14 = arith.constant 0 : index
    %c0_15 = arith.constant 0 : index
    %25 = vector.load %arg6[%c0_14, %c0_15] : memref<128x1xf32, #tpu.memory_space<vmem>>, vector<128x1xf32>
    tpu.vector_store %arg6[%c0_14, %c0_15], %24 {strides = array<i32>} : memref<128x1xf32, #tpu.memory_space<vmem>>, vector<128x1xf32>,
    return
  }
  func.func @transform_0(%arg0: i32) -> (i32, i32) {
    %c0_i32 = arith.constant 0 : i32
    %c0_i32_0 = arith.constant 0 : i32
    return %arg0, %c0_i32 : i32, i32
  }
  func.func @transform_1(%arg0: i32) -> (i32, i32) {
    %c0_i32 = arith.constant 0 : i32
    %c0_i32_0 = arith.constant 0 : i32
    %c0_i32_1 = arith.constant 0 : i32
    return %c0_i32, %c0_i32_0 : i32, i32
  }
  func.func @transform_2(%arg0: i32) -> (i32, i32) {
    %c0_i32 = arith.constant 0 : i32
    %c0_i32_0 = arith.constant 0 : i32
    %c0_i32_1 = arith.constant 0 : i32
    return %c0_i32, %c0_i32_0 : i32, i32
  }
  func.func @transform_3(%arg0: i32) -> (i32, i32) {
    %c0_i32 = arith.constant 0 : i32
    %c0_i32_0 = arith.constant 0 : i32
    %c0_i32_1 = arith.constant 0 : i32
    return %c0_i32, %c0_i32_0 : i32, i32
  }
  func.func @transform_4(%arg0: i32) -> (i32, i32) {
    %c0_i32 = arith.constant 0 : i32
    %c0_i32_0 = arith.constant 0 : i32
    %c0_i32_1 = arith.constant 0 : i32
    return %c0_i32, %c0_i32_0 : i32, i32
  }
  func.func @transform_5(%arg0: i32) -> (i32, i32) {
    %c0_i32 = arith.constant 0 : i32
    %c0_i32_0 = arith.constant 0 : i32
    return %arg0, %c0_i32 : i32, i32
  }
}

</mosaic_0001>

<llo_original>
// kernel: tpu_custom_call.1
$region0: #{tpu_custom_call.1}
  #allocation0 [shape = 'u32[]', space=smem, size = 0x4, offset = 0x4, fixed_abs, tag = 'smem constant byte address 0x4 - core index']
  #allocation1 [shape = 'u32[72,128]{1,0:T(1,128)}', space=vmem, size = 0x9000, scoped, tag = 'internal scratch']
  #allocation2 [shape = 'f32[1,1]{1,0:T(1,128)S(1)}', space=vmem, size = 0x200, scoped, tag = 'scoped memory for tpu_custom_call.1']
  %s0 = inlined_call_operand.vmem [shape: bf16[128,64], index: 0, kind: input, shape index: {}]
  %s1 = inlined_call_operand.vmem [shape: bf16[64,128], index: 1, kind: input, shape index: {}]
  %s2 = inlined_call_operand.vmem [shape: f32[1,128], index: 2, kind: input, shape index: {}]
  %s3 = inlined_call_operand.vmem [shape: f32[1,128], index: 3, kind: input, shape index: {}]
  %s4 = inlined_call_operand.<no memory space> [shape: f32[1,1], index: 4, kind: input, shape index: {}]
  %s5 = inlined_call_operand.vmem [shape: f32[128,1], index: 5, kind: output, shape index: {}]
  %s6 = sld [smem:[#allocation0]]
  $region30: #{tpu_custom_call.1} parent=0
    _
  %s8 = ssub.s32 1, %s6
  %s9 = scalar_select 0, %s8, %s6
  %v10 = vstv %s4
  %11 = vst [vmem:[#allocation2] sm:$0x1] %v10
  // Predicated region
  $region2: #{tpu_custom_call.1} parent=0 // pred_check
    _
  $region3: #{tpu_custom_call.1} parent=0 // pred_check_branch
    %13 = sbr.rel (0) target = $region5
  $region4: #{tpu_custom_call.1} parent=0 // pred_region
    _
  $region5: #{tpu_custom_call.1} parent=0 // pred_fallthru
    _
  // Predicated region
  $region6: #{tpu_custom_call.1} parent=0 // pred_check
    _
  $region7: #{tpu_custom_call.1} parent=0 // pred_check_branch
    %15 = sbr.rel (0) target = $region9
  $region8: #{tpu_custom_call.1} parent=0 // pred_region
    _
  $region9: #{tpu_custom_call.1} parent=0 // pred_fallthru
    _
  // Predicated region
  $region10: #{tpu_custom_call.1} parent=0 // pred_check
    _
  $region11: #{tpu_custom_call.1} parent=0 // pred_check_branch
    %17 = sbr.rel (0) target = $region13
  $region12: #{tpu_custom_call.1} parent=0 // pred_region
    _
  $region13: #{tpu_custom_call.1} parent=0 // pred_fallthru
    _
  // Predicated region
  $region14: #{tpu_custom_call.1} parent=0 // pred_check
    _
  $region15: #{tpu_custom_call.1} parent=0 // pred_check_branch
    %19 = sbr.rel (0) target = $region17
  $region16: #{tpu_custom_call.1} parent=0 // pred_region
    _
  $region17: #{tpu_custom_call.1} parent=0 // pred_fallthru
    _
  // Predicated region
  $region18: #{tpu_custom_call.1} parent=0 // pred_check
    _
  $region19: #{tpu_custom_call.1} parent=0 // pred_check_branch
    %21 = sbr.rel (0) target = $region21
  $region20: #{tpu_custom_call.1} parent=0 // pred_region
    _
  $region21: #{tpu_custom_call.1} parent=0 // pred_fallthru
    _
  %v23 = vld [vmem:[%s0] sm:$0xf]
  %v24 = vld [vmem:[%s0 + $0x4] sm:$0xf]
  %v25 = vld [vmem:[%s0 + $0x8] sm:$0xf]
  %v26 = vld [vmem:[%s0 + $0xc] sm:$0xf]
  %v27 = vld [vmem:[%s0 + $0x10] sm:$0xf]
  %v28 = vld [vmem:[%s0 + $0x14] sm:$0xf]
  %v29 = vld [vmem:[%s0 + $0x18] sm:$0xf]
  %v30 = vld [vmem:[%s0 + $0x1c] sm:$0xf]
  %v31 = vld [vmem:[%s0 + $0x20] sm:$0xf]
  %v32 = vld [vmem:[%s0 + $0x24] sm:$0xf]
  %v33 = vld [vmem:[%s0 + $0x28] sm:$0xf]
  %v34 = vld [vmem:[%s0 + $0x2c] sm:$0xf]
  %v35 = vld [vmem:[%s0 + $0x30] sm:$0xf]
  %v36 = vld [vmem:[%s0 + $0x34] sm:$0xf]
  %v37 = vld [vmem:[%s0 + $0x38] sm:$0xf]
  %v38 = vld [vmem:[%s0 + $0x3c] sm:$0xf]
  %v39 = vld [vmem:[%s1] sm:$0xf]
  %v40 = vld [vmem:[%s1 + $0x4] sm:$0xf]
  %v41 = vld [vmem:[%s1 + $0x8] sm:$0xf]
  %v42 = vld [vmem:[%s1 + $0xc] sm:$0xf]
  %v43 = vld [vmem:[%s1 + $0x10] sm:$0xf]
  %v44 = vld [vmem:[%s1 + $0x14] sm:$0xf]
  %v45 = vld [vmem:[%s1 + $0x18] sm:$0xf]
  %v46 = vld [vmem:[%s1 + $0x1c] sm:$0xf]
  %v47 = vld [vmem:[%s2] sm:$0x1]
  %v49 = vperm.slane %v47, 0
  %v67 = vunpack.c.l.b16 %v23
  %v68 = vunpack.c.l.b16 %v24
  %v69 = vunpack.c.l.b16 %v25
  %v70 = vunpack.c.l.b16 %v26
  %v71 = vunpack.c.l.b16 %v27
  %v72 = vunpack.c.l.b16 %v28
  %v73 = vunpack.c.l.b16 %v29
  %v74 = vunpack.c.l.b16 %v30
  %v75 = vunpack.c.l.b16 %v31
  %v76 = vunpack.c.l.b16 %v32
  %v77 = vunpack.c.l.b16 %v33
  %v78 = vunpack.c.l.b16 %v34
  %v79 = vunpack.c.l.b16 %v35
  %v80 = vunpack.c.l.b16 %v36
  %v81 = vunpack.c.l.b16 %v37
  %v82 = vunpack.c.l.b16 %v38
  %v83 = vpack.c.b16 %v68, %v67
  %v84 = vpack.c.b16 %v70, %v69
  %v85 = vpack.c.b16 %v72, %v71
  %v86 = vpack.c.b16 %v74, %v73
  %v87 = vpack.c.b16 %v76, %v75
  %v88 = vpack.c.b16 %v78, %v77
  %v89 = vpack.c.b16 %v80, %v79
  %v90 = vpack.c.b16 %v82, %v81
  %v99 = vunpack.c.l.b16 %v39
  %v100 = vunpack.c.l.b16 %v40
  %v101 = vunpack.c.l.b16 %v41
  %v102 = vunpack.c.l.b16 %v42
  %v103 = vunpack.c.l.b16 %v43
  %v104 = vunpack.c.l.b16 %v44
  %v105 = vunpack.c.l.b16 %v45
  %v106 = vunpack.c.l.b16 %v46
  %v107 = vpack.c.b16 %v100, %v99
  %v108 = vpack.c.b16 %v102, %v101
  %v109 = vpack.c.b16 %v104, %v103
  %v110 = vpack.c.b16 %v106, %v105
  %vm115 = vcmask 523264
  %v117 = vsel %vm115, %v83, 0
  %v120 = vsel %vm115, %v84, 0
  %v123 = vsel %vm115, %v85, 0
  %v126 = vsel %vm115, %v86, 0
  %v129 = vsel %vm115, %v87, 0
  %v132 = vsel %vm115, %v88, 0
  %v135 = vsel %vm115, %v89, 0
  %v138 = vsel %vm115, %v90, 0
  %140 = vmatpush.bf16.msra.mxu0 0
  %141 = vmatpush.bf16.msra.mxu0 0
  %142 = vmatpush.bf16.msra.mxu0 0
  %143 = vmatpush.bf16.msra.mxu0 0
  %144 = vmatpush.bf16.msra.mxu0 %v110
  %145 = vmatpush.bf16.msra.mxu0 %v109
  %146 = vmatpush.bf16.msra.mxu0 %v108
  %147 = vmatpush.bf16.msra.mxu0 %v107
  %148 = vmatmul.bf16.gmra.mxu0 %v117
  %v149 = vpop.f32.mrf.mxu0
  %v150 = vadd.f32 %v49, %v149
  %v151 = vpop.f32.mrf.mxu0
  %v152 = vadd.f32 %v49, %v151
  %153 = vmatmul.bf16.gmra.mxu0 %v120
  %v154 = vpop.f32.mrf.mxu0
  %v155 = vadd.f32 %v49, %v154
  %v156 = vpop.f32.mrf.mxu0
  %v157 = vadd.f32 %v49, %v156
  %158 = vmatmul.bf16.gmra.mxu0 %v123
  %v159 = vpop.f32.mrf.mxu0
  %v160 = vadd.f32 %v49, %v159
  %v161 = vpop.f32.mrf.mxu0
  %v162 = vadd.f32 %v49, %v161
  %163 = vmatmul.bf16.gmra.mxu0 %v126
  %v164 = vpop.f32.mrf.mxu0
  %v165 = vadd.f32 %v49, %v164
  %v166 = vpop.f32.mrf.mxu0
  %v167 = vadd.f32 %v49, %v166
  %168 = vmatmul.bf16.gmra.mxu0 %v129
  %v169 = vpop.f32.mrf.mxu0
  %v170 = vadd.f32 %v49, %v169
  %v171 = vpop.f32.mrf.mxu0
  %v172 = vadd.f32 %v49, %v171
  %173 = vmatmul.bf16.gmra.mxu0 %v132
  %v174 = vpop.f32.mrf.mxu0
  %v175 = vadd.f32 %v49, %v174
  %v176 = vpop.f32.mrf.mxu0
  %v177 = vadd.f32 %v49, %v176
  %178 = vmatmul.bf16.gmra.mxu0 %v135
  %v179 = vpop.f32.mrf.mxu0
  %v180 = vadd.f32 %v49, %v179
  %v181 = vpop.f32.mrf.mxu0
  %v182 = vadd.f32 %v49, %v181
  %183 = vmatmul.bf16.gmra.mxu0 %v138
  %v184 = vpop.f32.mrf.mxu0
  %v185 = vadd.f32 %v49, %v184
  %v186 = vpop.f32.mrf.mxu0
  %v187 = vadd.f32 %v49, %v186
  %188 = vdwg.mxu0
  %vm189 = vcmp.gt.f32.partialorder %v150, 0.0
  %vm190 = vcmp.gt.f32.partialorder %v152, 0.0
  %vm191 = vcmp.gt.f32.partialorder %v155, 0.0
  %vm192 = vcmp.gt.f32.partialorder %v157, 0.0
  %vm193 = vcmp.gt.f32.partialorder %v160, 0.0
  %vm194 = vcmp.gt.f32.partialorder %v162, 0.0
  %vm195 = vcmp.gt.f32.partialorder %v165, 0.0
  %vm196 = vcmp.gt.f32.partialorder %v167, 0.0
  %vm197 = vcmp.gt.f32.partialorder %v170, 0.0
  %vm198 = vcmp.gt.f32.partialorder %v172, 0.0
  %vm199 = vcmp.gt.f32.partialorder %v175, 0.0
  %vm200 = vcmp.gt.f32.partialorder %v177, 0.0
  %vm201 = vcmp.gt.f32.partialorder %v180, 0.0
  %vm202 = vcmp.gt.f32.partialorder %v182, 0.0
  %vm203 = vcmp.gt.f32.partialorder %v185, 0.0
  %vm204 = vcmp.gt.f32.partialorder %v187, 0.0
  %v205 = vmul.f32 %v150, 0.01
  %v206 = vmul.f32 %v152, 0.01
  %v207 = vmul.f32 %v155, 0.01
  %v208 = vmul.f32 %v157, 0.01
  %v209 = vmul.f32 %v160, 0.01
  %v210 = vmul.f32 %v162, 0.01
  %v211 = vmul.f32 %v165, 0.01
  %v212 = vmul.f32 %v167, 0.01
  %v213 = vmul.f32 %v170, 0.01
  %v214 = vmul.f32 %v172, 0.01
  %v215 = vmul.f32 %v175, 0.01
  %v216 = vmul.f32 %v177, 0.01
  %v217 = vmul.f32 %v180, 0.01
  %v218 = vmul.f32 %v182, 0.01
  %v219 = vmul.f32 %v185, 0.01
  %v220 = vmul.f32 %v187, 0.01
  %v221 = vsel %vm189, %v150, %v205
  %v222 = vsel %vm190, %v152, %v206
  %v223 = vsel %vm191, %v155, %v207
  %v224 = vsel %vm192, %v157, %v208
  %v225 = vsel %vm193, %v160, %v209
  %v226 = vsel %vm194, %v162, %v210
  %v227 = vsel %vm195, %v165, %v211
  %v228 = vsel %vm196, %v167, %v212
  %v229 = vsel %vm197, %v170, %v213
  %v230 = vsel %vm198, %v172, %v214
  %v231 = vsel %vm199, %v175, %v215
  %v232 = vsel %vm200, %v177, %v216
  %v233 = vsel %vm201, %v180, %v217
  %v234 = vsel %vm202, %v182, %v218
  %v235 = vsel %vm203, %v185, %v219
  %v236 = vsel %vm204, %v187, %v220
  %v237 = vld [vmem:[%s3] sm:$0x1]
  %v239 = vperm.slane %v237, 0
  %v241 = vmul.f32 %v221, %v239
  %v242 = vmul.f32 %v222, %v239
  %v243 = vmul.f32 %v223, %v239
  %v244 = vmul.f32 %v224, %v239
  %v245 = vmul.f32 %v225, %v239
  %v246 = vmul.f32 %v226, %v239
  %v247 = vmul.f32 %v227, %v239
  %v248 = vmul.f32 %v228, %v239
  %v249 = vmul.f32 %v229, %v239
  %v250 = vmul.f32 %v230, %v239
  %v251 = vmul.f32 %v231, %v239
  %v252 = vmul.f32 %v232, %v239
  %v253 = vmul.f32 %v233, %v239
  %v254 = vmul.f32 %v234, %v239
  %v255 = vmul.f32 %v235, %v239
  %v256 = vmul.f32 %v236, %v239
  %257 = vadd.xlane.f32.xlu0 %v241
  %v258 = vpop.xlane.xlu0 %257
  %259 = vadd.xlane.f32.xlu0 %v242
  %v260 = vpop.xlane.xlu0 %259
  %261 = vadd.xlane.f32.xlu0 %v243
  %v262 = vpop.xlane.xlu0 %261
  %263 = vadd.xlane.f32.xlu0 %v244
  %v264 = vpop.xlane.xlu0 %263
  %265 = vadd.xlane.f32.xlu0 %v245
  %v266 = vpop.xlane.xlu0 %265
  %267 = vadd.xlane.f32.xlu0 %v246
  %v268 = vpop.xlane.xlu0 %267
  %269 = vadd.xlane.f32.xlu0 %v247
  %v270 = vpop.xlane.xlu0 %269
  %271 = vadd.xlane.f32.xlu0 %v248
  %v272 = vpop.xlane.xlu0 %271
  %273 = vadd.xlane.f32.xlu0 %v249
  %v274 = vpop.xlane.xlu0 %273
  %275 = vadd.xlane.f32.xlu0 %v250
  %v276 = vpop.xlane.xlu0 %275
  %277 = vadd.xlane.f32.xlu0 %v251
  %v278 = vpop.xlane.xlu0 %277
  %279 = vadd.xlane.f32.xlu0 %v252
  %v280 = vpop.xlane.xlu0 %279
  %281 = vadd.xlane.f32.xlu0 %v253
  %v282 = vpop.xlane.xlu0 %281
  %283 = vadd.xlane.f32.xlu0 %v254
  %v284 = vpop.xlane.xlu0 %283
  %285 = vadd.xlane.f32.xlu0 %v255
  %v286 = vpop.xlane.xlu0 %285
  %287 = vadd.xlane.f32.xlu0 %v256
  %v288 = vpop.xlane.xlu0 %287
  %v289 = vld [vmem:[#allocation2] sm:$0x1]
  %v291 = vperm.slane %v289, 0
  %v293 = vadd.f32 %v258, %v291
  %v294 = vadd.f32 %v260, %v291
  %v295 = vadd.f32 %v262, %v291
  %v296 = vadd.f32 %v264, %v291
  %v297 = vadd.f32 %v266, %v291
  %v298 = vadd.f32 %v268, %v291
  %v299 = vadd.f32 %v270, %v291
  %v300 = vadd.f32 %v272, %v291
  %v301 = vadd.f32 %v274, %v291
  %v302 = vadd.f32 %v276, %v291
  %v303 = vadd.f32 %v278, %v291
  %v304 = vadd.f32 %v280, %v291
  %v305 = vadd.f32 %v282, %v291
  %v306 = vadd.f32 %v284, %v291
  %v307 = vadd.f32 %v286, %v291
  %v308 = vadd.f32 %v288, %v291
  %v309 = vsub.f32 0.0, %v293
  %v310 = vsub.f32 0.0, %v294
  %v311 = vsub.f32 0.0, %v295
  %v312 = vsub.f32 0.0, %v296
  %v313 = vsub.f32 0.0, %v297
  %v314 = vsub.f32 0.0, %v298
  %v315 = vsub.f32 0.0, %v299
  %v316 = vsub.f32 0.0, %v300
  %v317 = vsub.f32 0.0, %v301
  %v318 = vsub.f32 0.0, %v302
  %v319 = vsub.f32 0.0, %v303
  %v320 = vsub.f32 0.0, %v304
  %v321 = vsub.f32 0.0, %v305
  %v322 = vsub.f32 0.0, %v306
  %v323 = vsub.f32 0.0, %v307
  %v324 = vsub.f32 0.0, %v308
  %v325 = vmul.f32 %v309, 1.442695
  %v326 = vpow.pop %v325
  %v327 = vmul.f32 %v310, 1.442695
  %v328 = vpow.pop %v327
  %v329 = vmul.f32 %v311, 1.442695
  %v330 = vpow.pop %v329
  %v331 = vmul.f32 %v312, 1.442695
  %v332 = vpow.pop %v331
  %v333 = vmul.f32 %v313, 1.442695
  %v334 = vpow.pop %v333
  %v335 = vmul.f32 %v314, 1.442695
  %v336 = vpow.pop %v335
  %v337 = vmul.f32 %v315, 1.442695
  %v338 = vpow.pop %v337
  %v339 = vmul.f32 %v316, 1.442695
  %v340 = vpow.pop %v339
  %v341 = vmul.f32 %v317, 1.442695
  %v342 = vpow.pop %v341
  %v343 = vmul.f32 %v318, 1.442695
  %v344 = vpow.pop %v343
  %v345 = vmul.f32 %v319, 1.442695
  %v346 = vpow.pop %v345
  %v347 = vmul.f32 %v320, 1.442695
  %v348 = vpow.pop %v347
  %v349 = vmul.f32 %v321, 1.442695
  %v350 = vpow.pop %v349
  %v351 = vmul.f32 %v322, 1.442695
  %v352 = vpow.pop %v351
  %v353 = vmul.f32 %v323, 1.442695
  %v354 = vpow.pop %v353
  %v355 = vmul.f32 %v324, 1.442695
  %v356 = vpow.pop %v355
  %v357 = vadd.f32 %v326, 1.0
  %v358 = vadd.f32 %v328, 1.0
  %v359 = vadd.f32 %v330, 1.0
  %v360 = vadd.f32 %v332, 1.0
  %v361 = vadd.f32 %v334, 1.0
  %v362 = vadd.f32 %v336, 1.0
  %v363 = vadd.f32 %v338, 1.0
  %v364 = vadd.f32 %v340, 1.0
  %v365 = vadd.f32 %v342, 1.0
  %v366 = vadd.f32 %v344, 1.0
  %v367 = vadd.f32 %v346, 1.0
  %v368 = vadd.f32 %v348, 1.0
  %v369 = vadd.f32 %v350, 1.0
  %v370 = vadd.f32 %v352, 1.0
  %v371 = vadd.f32 %v354, 1.0
  %v372 = vadd.f32 %v356, 1.0
  %v373 = vrcp.pop %v357
  %v374 = vrcp.pop %v358
  %v375 = vrcp.pop %v359
  %v376 = vrcp.pop %v360
  %v377 = vrcp.pop %v361
  %v378 = vrcp.pop %v362
  %v379 = vrcp.pop %v363
  %v380 = vrcp.pop %v364
  %v381 = vrcp.pop %v365
  %v382 = vrcp.pop %v366
  %v383 = vrcp.pop %v367
  %v384 = vrcp.pop %v368
  %v385 = vrcp.pop %v369
  %v386 = vrcp.pop %v370
  %v387 = vrcp.pop %v371
  %v388 = vrcp.pop %v372
  %vm389 = vcmask 7168
  %390 = vst.msk [vmem:[%s5] sm:$0xff] %vm389, %v373
  %391 = vst.msk [vmem:[%s5 + $0x8] sm:$0xff] %vm389, %v374
  %392 = vst.msk [vmem:[%s5 + $0x10] sm:$0xff] %vm389, %v375
  %393 = vst.msk [vmem:[%s5 + $0x18] sm:$0xff] %vm389, %v376
  %394 = vst.msk [vmem:[%s5 + $0x20] sm:$0xff] %vm389, %v377
  %395 = vst.msk [vmem:[%s5 + $0x28] sm:$0xff] %vm389, %v378
  %396 = vst.msk [vmem:[%s5 + $0x30] sm:$0xff] %vm389, %v379
  %397 = vst.msk [vmem:[%s5 + $0x38] sm:$0xff] %vm389, %v380
  %398 = vst.msk [vmem:[%s5 + $0x40] sm:$0xff] %vm389, %v381
  %399 = vst.msk [vmem:[%s5 + $0x48] sm:$0xff] %vm389, %v382
  %400 = vst.msk [vmem:[%s5 + $0x50] sm:$0xff] %vm389, %v383
  %401 = vst.msk [vmem:[%s5 + $0x58] sm:$0xff] %vm389, %v384
  %402 = vst.msk [vmem:[%s5 + $0x60] sm:$0xff] %vm389, %v385
  %403 = vst.msk [vmem:[%s5 + $0x68] sm:$0xff] %vm389, %v386
  %404 = vst.msk [vmem:[%s5 + $0x70] sm:$0xff] %vm389, %v387
  %405 = vst.msk [vmem:[%s5 + $0x78] sm:$0xff] %vm389, %v388
  // Predicated region
  $region22: #{tpu_custom_call.1} parent=0 // pred_check
    _
  $region23: #{tpu_custom_call.1} parent=0 // pred_check_branch
    %407 = sbr.rel (0) target = $region25
  $region24: #{tpu_custom_call.1} parent=0 // pred_region
    _
  $region25: #{tpu_custom_call.1} parent=0 // pred_fallthru
    _
  // Predicated region
  $region26: #{tpu_custom_call.1} parent=0 // pred_check
    _
  $region27: #{tpu_custom_call.1} parent=0 // pred_check_branch
    %409 = sbr.rel (0) target = $region29
  $region28: #{tpu_custom_call.1} parent=0 // pred_region
    _
  $region29: #{tpu_custom_call.1} parent=0 // pred_fallthru
    _

</llo_original>
